<compile_context>
chip_gen: v6e
topology: v6e:2x2x1
jax: 0.10.0
libtpu: 0.0.40
codegen_flags: <defaults>
</compile_context>

<pallas_src>
import numpy as np
import jax
import jax.numpy as jnp
from jax.experimental import pallas as pl
from jax.experimental.pallas import tpu as pltpu

LANE = 128


def _round_up(x, m):
    return (x + m - 1) // m * m


# ----------------------------- Pallas kernels -----------------------------
# Each conv is a single (M, Kp) x (Kp, Np) MXU matmul with the bias / ReLU /
# residual-add fused into the epilogue (free VPU filler slots).

def _mm_bias_relu_kernel(x_ref, w_ref, b_ref, o_ref):
    acc = jnp.dot(x_ref[...], w_ref[...], preferred_element_type=jnp.float32)
    o_ref[...] = jnp.maximum(acc + b_ref[...], 0.0).astype(o_ref.dtype)


def _mm_bias_res_kernel(x_ref, w_ref, b_ref, r_ref, o_ref):
    acc = jnp.dot(x_ref[...], w_ref[...], preferred_element_type=jnp.float32)
    o_ref[...] = (acc + b_ref[...] + r_ref[...]).astype(o_ref.dtype)


def _pick_tm(m):
    """M-tile: multiple of 8, >=2 tiles so both v7x TensorCores get work,
    small enough to stay far under v7x's 64 MiB VMEM with double buffering."""
    for tm in (512, 256, 128, 64, 32, 16, 8):
        if m % tm == 0 and m // tm >= 2:
            return tm
    return m  # fallback: single full-extent block (always legal)


def pallas_conv_matmul(cols, w_pad, b_pad, res=None):
    """cols: (M, Kp), w_pad: (Kp, Np), b_pad: (1, Np), res: (M, Np) or None.
    Kp and Np are multiples of 128 -> lane-dense loads and unmasked stores."""
    m, kp = cols.shape
    np_ = w_pad.shape[1]
    tm = _pick_tm(m)
    grid = (m // tm,)

    in_specs = [
        pl.BlockSpec((tm, kp), lambda i: (i, 0)),     # activation tile, pipelined
        pl.BlockSpec((kp, np_), lambda i: (0, 0)),    # weights pinned (VMEM-resident)
        pl.BlockSpec((1, np_), lambda i: (0, 0)),     # bias pinned
    ]
    args = [cols, w_pad, b_pad]
    if res is None:
        kernel = _mm_bias_relu_kernel
    else:
        kernel = _mm_bias_res_kernel
        in_specs.append(pl.BlockSpec((tm, np_), lambda i: (i, 0)))  # residual tile
        args.append(res)

    return pl.pallas_call(
        kernel,
        out_shape=jax.ShapeDtypeStruct((m, np_), jnp.float32),
        grid=grid,
        in_specs=in_specs,
        out_specs=pl.BlockSpec((tm, np_), lambda i: (i, 0)),
        compiler_params=pltpu.CompilerParams(
            dimension_semantics=("parallel",)),
    )(*args)


# --------------------------- layer "modules" -------------------------------

class PallasConvBiasReLU3x3:
    """3x3 same-padding conv + bias + ReLU (fused epilogue). NHWC in/out.
    PyTorch Conv2d weight layout / init semantics."""

    def __init__(self, key, cin, cout):
        wkey, bkey = jax.random.split(key)
        fan_in = cin * 9
        bound = 1.0 / np.sqrt(fan_in)
        # PyTorch Conv2d weight layout: (Cout, Cin, kH, kW), U(-bound, bound).
        self.w_oihw = jax.random.uniform(
            wkey, (cout, cin, 3, 3), jnp.float32, -bound, bound)
        self.b = jax.random.uniform(bkey, (cout,), jnp.float32, -bound, bound)
        self.cin, self.cout = cin, cout

        # Lane-pad K (= 9*Cin) and N (= Cout) to multiples of 128 with zeros so
        # the kernel's loads/stores are lane-dense; valid channels sliced back
        # in the wrapper.  Row index of w_mat = (ky*3 + kx)*Cin + ci, matching
        # the im2col concat order below.
        self.kp = _round_up(9 * cin, LANE)
        self.np_ = _round_up(cout, LANE)
        w_mat = jnp.transpose(self.w_oihw, (2, 3, 1, 0)).reshape(9 * cin, cout)
        self.w_pad = jnp.pad(w_mat, ((0, self.kp - 9 * cin),
                                     (0, self.np_ - cout)))
        self.b_pad = jnp.pad(self.b, (0, self.np_ - cout)).reshape(1, self.np_)

    def _im2col(self, x_nhwc):
        # TODO(synk): im2col (pad + 9 shifted slices + concat) still runs in
        # XLA; an in-kernel 9-tap accumulating matmul would remove the ~9x
        # HBM read amplification of the cols matrix.
        n, h, w, c = x_nhwc.shape
        xp = jnp.pad(x_nhwc, ((0, 0), (1, 1), (1, 1), (0, 0)))
        patches = [xp[:, ky:ky + h, kx:kx + w, :]
                   for ky in range(3) for kx in range(3)]
        cols = jnp.concatenate(patches, axis=-1).reshape(n * h * w, 9 * c)
        return jnp.pad(cols, ((0, 0), (0, self.kp - 9 * c)))

    def __call__(self, x_nhwc):
        n, h, w, _ = x_nhwc.shape
        cols = self._im2col(x_nhwc)
        out = pallas_conv_matmul(cols, self.w_pad, self.b_pad)
        return out[:, :self.cout].reshape(n, h, w, self.cout)


class PallasConvBiasAdd3x3(PallasConvBiasReLU3x3):
    """3x3 conv + bias + residual add (fused epilogue). NHWC in/out."""

    def __call__(self, x_nhwc, residual_nhwc):
        n, h, w, _ = x_nhwc.shape
        cols = self._im2col(x_nhwc)
        res = residual_nhwc.reshape(n * h * w, self.cout)
        res = jnp.pad(res, ((0, 0), (0, self.np_ - self.cout)))
        out = pallas_conv_matmul(cols, self.w_pad, self.b_pad, res=res)
        return out[:, :self.cout].reshape(n, h, w, self.cout)


class ToNHWC:
    def __call__(self, x):  # NCHW -> NHWC (once, at stream entry)
        return jnp.transpose(x, (0, 2, 3, 1))


class ToNCHW:
    def __call__(self, x):  # NHWC -> NCHW (once, at stream exit)
        return jnp.transpose(x, (0, 3, 1, 2))


# ----------------------- StreamModule forward semantics --------------------

class StreamModule:
    """JAX analogue of kurisunet StreamModule: (former, module) wiring + the
    same results_dict-walking forward()."""
    # TODO(synk): ModuleRegister string lookup / drop_set & unused_set pruning
    # / logging are Python config machinery with no tensor semantics; omitted.

    def __init__(self, name, layers):
        self._name = name
        self._modules = {i: (former, module)
                         for i, (former, module) in enumerate(layers, start=1)}

    def get_module_name(self):
        return self._name

    def forward(self, x):
        def get_input(former, results):
            return tuple(results[k] if v == 'all' else results[k][v]
                         for k, v in former)

        results_dict = {0: x}
        out = x
        for i, (former, module) in self._modules.items():
            out = module(*get_input(former, results_dict))
            results_dict[i] = out
        return out

    __call__ = forward


# --------------------------------- main ------------------------------------

def _conv_ref(x, w_oihw, b):
    out = jax.lax.conv_general_dilated(
        x, w_oihw, window_strides=(1, 1), padding=((1, 1), (1, 1)),
        dimension_numbers=('NCHW', 'OIHW', 'NCHW'),
        precision=jax.lax.Precision.HIGHEST)
    return out + b.reshape(1, -1, 1, 1)


if __name__ == "__main__":
    key = jax.random.PRNGKey(0)
    kx, k1, k2 = jax.random.split(key, 3)

    N, C, H, W = 2, 4, 16, 16
    x = jax.random.normal(kx, (N, C, H, W), jnp.float32)

    conv1 = PallasConvBiasReLU3x3(k1, cin=4, cout=8)
    conv2 = PallasConvBiasAdd3x3(k2, cin=8, cout=4)

    # Stream graph (NCHW at the module boundary, NHWC internally):
    #   1: NCHW->NHWC                    former = [(0,'all')]
    #   2: conv1 + bias + relu (fused)   former = [(1,'all')]
    #   3: conv2 + bias + residual       former = [(2,'all'), (1,'all')]
    #   4: NHWC->NCHW                    former = [(3,'all')]
    layers = [
        ([(0, 'all')], ToNHWC()),
        ([(1, 'all')], conv1),
        ([(2, 'all'), (1, 'all')], conv2),
        ([(3, 'all')], ToNCHW()),
    ]
    net = StreamModule("stream_demo", layers)

    fwd = jax.jit(net.forward)
    out = jax.block_until_ready(fwd(x))
    assert out.shape == (N, C, H, W) and out.dtype == jnp.float32

    # Pure-JAX reference of the same stream graph (all-f32, tight tolerance).
    ref = _conv_ref(x, conv1.w_oihw, conv1.b)
    ref = jnp.maximum(ref, 0.0)
    ref = _conv_ref(ref, conv2.w_oihw, conv2.b)
    ref = ref + x
    np.testing.assert_allclose(np.asarray(out), np.asarray(ref),
                               rtol=1e-4, atol=1e-4)

    print("KERNEL_OK")
</pallas_src>

<mosaic_0001>
module attributes {stable_mosaic.version = 11 : i64} {
  func.func @_mm_bias_relu_kernel(%arg0: i32, %arg1: memref<256x128xf32, #tpu.memory_space<vmem>>, %arg2: memref<128x128xf32, #tpu.memory_space<vmem>>, %arg3: memref<1x128xf32, #tpu.memory_space<vmem>>, %arg4: memref<256x128xf32, #tpu.memory_space<vmem>>) attributes {dimension_semantics = [#tpu.dimension_semantics<parallel>], iteration_bounds = array<i64: 2>, scalar_prefetch = 0 : i64, scratch_operands = 0 : i64, tpu.core_type = #tpu.core_type<tc>, window_params = [{transform_indices = @transform_0, window_bounds = array<i64: 256, 128>}, {pipeline_mode = #tpu.pipeline_mode<synchronous>, transform_indices = @transform_1, window_bounds = array<i64: 128, 128>}, {pipeline_mode = #tpu.pipeline_mode<synchronous>, transform_indices = @transform_2, window_bounds = array<i64: 1, 128>}, {transform_indices = @transform_3, window_bounds = array<i64: 256, 128>}]} {
    %c0 = arith.constant 0 : index
    %c0_0 = arith.constant 0 : index
    %0 = vector.load %arg1[%c0, %c0_0] : memref<256x128xf32, #tpu.memory_space<vmem>>, vector<256x128xf32>
    %c0_1 = arith.constant 0 : index
    %c0_2 = arith.constant 0 : index
    %1 = vector.load %arg2[%c0_1, %c0_2] : memref<128x128xf32, #tpu.memory_space<vmem>>, vector<128x128xf32>
    %cst = arith.constant dense<0.000000e+00> : vector<256x128xf32>
    %2 = tpu.matmul %0, %1, %cst {dimension_numbers = #tpu.dot_dimension_numbers<[1], [0], [0], [1], [0, 0, 1, 1], [], []>} : vector<256x128xf32>, vector<128x128xf32>, vector<256x128xf32> -> vector<256x128xf32>
    %c0_3 = arith.constant 0 : index
    %c0_4 = arith.constant 0 : index
    %3 = vector.load %arg3[%c0_3, %c0_4] : memref<1x128xf32, #tpu.memory_space<vmem>>, vector<1x128xf32>
    %4 = vector.broadcast %3 : vector<1x128xf32> to vector<256x128xf32>
    %5 = arith.addf %2, %4 : vector<256x128xf32>
    %cst_5 = arith.constant 0.000000e+00 : f32
    %6 = vector.broadcast %cst_5 : f32 to vector<256x128xf32>
    %7 = arith.maximumf %5, %6 : vector<256x128xf32>
    %c0_6 = arith.constant 0 : index
    %c0_7 = arith.constant 0 : index
    %8 = vector.load %arg4[%c0_6, %c0_7] : memref<256x128xf32, #tpu.memory_space<vmem>>, vector<256x128xf32>
    tpu.vector_store %arg4[%c0_6, %c0_7], %7 {strides = array<i32>} : memref<256x128xf32, #tpu.memory_space<vmem>>, vector<256x128xf32>,
    return
  }
  func.func @transform_0(%arg0: i32) -> (i32, i32) {
    %c0_i32 = arith.constant 0 : i32
    %c0_i32_0 = arith.constant 0 : i32
    return %arg0, %c0_i32 : i32, i32
  }
  func.func @transform_1(%arg0: i32) -> (i32, i32) {
    %c0_i32 = arith.constant 0 : i32
    %c0_i32_0 = arith.constant 0 : i32
    %c0_i32_1 = arith.constant 0 : i32
    return %c0_i32, %c0_i32_0 : i32, i32
  }
  func.func @transform_2(%arg0: i32) -> (i32, i32) {
    %c0_i32 = arith.constant 0 : i32
    %c0_i32_0 = arith.constant 0 : i32
    %c0_i32_1 = arith.constant 0 : i32
    return %c0_i32, %c0_i32_0 : i32, i32
  }
  func.func @transform_3(%arg0: i32) -> (i32, i32) {
    %c0_i32 = arith.constant 0 : i32
    %c0_i32_0 = arith.constant 0 : i32
    return %arg0, %c0_i32 : i32, i32
  }
}

module attributes {stable_mosaic.version = 11 : i64} {
  func.func @_mm_bias_res_kernel(%arg0: i32, %arg1: memref<256x128xf32, #tpu.memory_space<vmem>>, %arg2: memref<128x128xf32, #tpu.memory_space<vmem>>, %arg3: memref<1x128xf32, #tpu.memory_space<vmem>>, %arg4: memref<256x128xf32, #tpu.memory_space<vmem>>, %arg5: memref<256x128xf32, #tpu.memory_space<vmem>>) attributes {dimension_semantics = [#tpu.dimension_semantics<parallel>], iteration_bounds = array<i64: 2>, scalar_prefetch = 0 : i64, scratch_operands = 0 : i64, tpu.core_type = #tpu.core_type<tc>, window_params = [{transform_indices = @transform_0, window_bounds = array<i64: 256, 128>}, {pipeline_mode = #tpu.pipeline_mode<synchronous>, transform_indices = @transform_1, window_bounds = array<i64: 128, 128>}, {pipeline_mode = #tpu.pipeline_mode<synchronous>, transform_indices = @transform_2, window_bounds = array<i64: 1, 128>}, {transform_indices = @transform_3, window_bounds = array<i64: 256, 128>}, {transform_indices = @transform_4, window_bounds = array<i64: 256, 128>}]} {
    %c0 = arith.constant 0 : index
    %c0_0 = arith.constant 0 : index
    %0 = vector.load %arg1[%c0, %c0_0] : memref<256x128xf32, #tpu.memory_space<vmem>>, vector<256x128xf32>
    %c0_1 = arith.constant 0 : index
    %c0_2 = arith.constant 0 : index
    %1 = vector.load %arg2[%c0_1, %c0_2] : memref<128x128xf32, #tpu.memory_space<vmem>>, vector<128x128xf32>
    %cst = arith.constant dense<0.000000e+00> : vector<256x128xf32>
    %2 = tpu.matmul %0, %1, %cst {dimension_numbers = #tpu.dot_dimension_numbers<[1], [0], [0], [1], [0, 0, 1, 1], [], []>} : vector<256x128xf32>, vector<128x128xf32>, vector<256x128xf32> -> vector<256x128xf32>
    %c0_3 = arith.constant 0 : index
    %c0_4 = arith.constant 0 : index
    %3 = vector.load %arg3[%c0_3, %c0_4] : memref<1x128xf32, #tpu.memory_space<vmem>>, vector<1x128xf32>
    %4 = vector.broadcast %3 : vector<1x128xf32> to vector<256x128xf32>
    %5 = arith.addf %2, %4 : vector<256x128xf32>
    %c0_5 = arith.constant 0 : index
    %c0_6 = arith.constant 0 : index
    %6 = vector.load %arg4[%c0_5, %c0_6] : memref<256x128xf32, #tpu.memory_space<vmem>>, vector<256x128xf32>
    %7 = arith.addf %5, %6 : vector<256x128xf32>
    %c0_7 = arith.constant 0 : index
    %c0_8 = arith.constant 0 : index
    %8 = vector.load %arg5[%c0_7, %c0_8] : memref<256x128xf32, #tpu.memory_space<vmem>>, vector<256x128xf32>
    tpu.vector_store %arg5[%c0_7, %c0_8], %7 {strides = array<i32>} : memref<256x128xf32, #tpu.memory_space<vmem>>, vector<256x128xf32>,
    return
  }
  func.func @transform_0(%arg0: i32) -> (i32, i32) {
    %c0_i32 = arith.constant 0 : i32
    %c0_i32_0 = arith.constant 0 : i32
    return %arg0, %c0_i32 : i32, i32
  }
  func.func @transform_1(%arg0: i32) -> (i32, i32) {
    %c0_i32 = arith.constant 0 : i32
    %c0_i32_0 = arith.constant 0 : i32
    %c0_i32_1 = arith.constant 0 : i32
    return %c0_i32, %c0_i32_0 : i32, i32
  }
  func.func @transform_2(%arg0: i32) -> (i32, i32) {
    %c0_i32 = arith.constant 0 : i32
    %c0_i32_0 = arith.constant 0 : i32
    %c0_i32_1 = arith.constant 0 : i32
    return %c0_i32, %c0_i32_0 : i32, i32
  }
  func.func @transform_3(%arg0: i32) -> (i32, i32) {
    %c0_i32 = arith.constant 0 : i32
    %c0_i32_0 = arith.constant 0 : i32
    return %arg0, %c0_i32 : i32, i32
  }
  func.func @transform_4(%arg0: i32) -> (i32, i32) {
    %c0_i32 = arith.constant 0 : i32
    %c0_i32_0 = arith.constant 0 : i32
    return %arg0, %c0_i32 : i32, i32
  }
}

</mosaic_0001>

<llo_original>
// kernel: forward.2
$region0: #{forward.2}
  #allocation0 [shape = 'u32[]', space=smem, size = 0x4, offset = 0x4, fixed_abs, tag = 'smem constant byte address 0x4 - core index']
  #allocation1 [shape = 'u32[144,128]{1,0:T(1,128)}', space=vmem, size = 0x12000, scoped, tag = 'internal scratch']
  %s0 = inlined_call_operand.vmem [shape: f32[512,128], index: 0, kind: input, shape index: {}]
  %s1 = inlined_call_operand.vmem [shape: f32[128,128], index: 1, kind: input, shape index: {}]
  %s2 = inlined_call_operand.vmem [shape: f32[1,128], index: 2, kind: input, shape index: {}]
  %s3 = inlined_call_operand.vmem [shape: f32[512,128], index: 3, kind: output, shape index: {}]
  %s4 = sld [smem:[#allocation0]]
  $region45: #{forward.2} parent=0
    _
  %s6 = ssub.s32 1, %s4
  %s7 = scalar_select 0, %s6, %s4
  loop: start=0, step=1, limit=4
  $region2: #{forward.2} parent=0 // loop_pre_header
    _
  $region3: #{forward.2} parent=0 // loop_header
    %s9 = sphi 0, %s13
    %p10 = scmp.ge.s32.totalorder %s9, 4
    %s19 = sphi 0, %s21
    %s22 = sphi 0, %s19
    %s23 = sphi 0, %s22
    %s39 = sphi 0, %s23
    %s43 = sphi 0, %s43
    %s45 = sphi 0, %s43
    %s46 = sphi 0, %s45
    %s60 = sphi 0, %s46
    %s64 = sphi 0, %s64
    %s66 = sphi 0, %s64
    %s67 = sphi 0, %s66
    %s81 = sphi 0, %s67
    %s87 = sphi 0, %s89
    %s90 = sphi 0, %s87
    %s91 = sphi 0, %s90
    %s107 = sphi 0, %s91
  $region4: #{forward.2} parent=0 // loop_header_branch
    %12 = sbr.rel (%p10) target = $region8
  $region5: #{forward.2} parent=0 // loop_body
    %s14 = ssub.s32 %s9, 1
    %s15 = ssub.s32 %s9, 2
    %s16 = sadd.s32 %s9, 1
    %s17 = ssub.s32 %s9, %s16
    %p18 = scmp.eq.s32.totalorder %s17, 0
    %s20 = sadd.s32 %s19, 1
    %s21 = scalar_select %p18, %s19, %s20
    %p24 = pneg %p18
    %p25 = scmp.eq.s32.totalorder %s9, 1
    %p26 = por %p24, %p25
    %p27 = scmp.ne.s32.totalorder %s19, %s22
    %p28 = scmp.eq.s32.totalorder %s9, 0
    %p29 = por %p27, %p28
    %p30 = scmp.ne.s32.totalorder %s19, %s22
    %p31 = scmp.eq.s32.totalorder %s14, 1
    %p32 = por %p30, %p31
    %p33 = scmp.ne.s32.totalorder %s22, %s23
    %p34 = scmp.eq.s32.totalorder %s14, 0
    %p35 = por %p33, %p34
    %p36 = scmp.ne.s32.totalorder %s22, %s23
    %p37 = scmp.eq.s32.totalorder %s15, 1
    %p38 = por %p36, %p37
    %p40 = scmp.ne.s32.totalorder %s23, %s39
    %p41 = scmp.eq.s32.totalorder %s15, 0
    %p42 = por %p40, %p41
    %s44 = sadd.s32 %s43, 1
    %p47 = scmp.eq.s32.totalorder %s9, 1
    %p48 = scmp.ne.s32.totalorder %s43, %s45
    %p49 = scmp.eq.s32.totalorder %s9, 0
    %p50 = por %p48, %p49
    %p51 = scmp.ne.s32.totalorder %s43, %s45
    %p52 = scmp.eq.s32.totalorder %s14, 1
    %p53 = por %p51, %p52
    %p54 = scmp.ne.s32.totalorder %s45, %s46
    %p55 = scmp.eq.s32.totalorder %s14, 0
    %p56 = por %p54, %p55
    %p57 = scmp.ne.s32.totalorder %s45, %s46
    %p58 = scmp.eq.s32.totalorder %s15, 1
    %p59 = por %p57, %p58
    %p61 = scmp.ne.s32.totalorder %s46, %s60
    %p62 = scmp.eq.s32.totalorder %s15, 0
    %p63 = por %p61, %p62
    %s65 = sadd.s32 %s64, 1
    %p68 = scmp.eq.s32.totalorder %s9, 1
    %p69 = scmp.ne.s32.totalorder %s64, %s66
    %p70 = scmp.eq.s32.totalorder %s9, 0
    %p71 = por %p69, %p70
    %p72 = scmp.ne.s32.totalorder %s64, %s66
    %p73 = scmp.eq.s32.totalorder %s14, 1
    %p74 = por %p72, %p73
    %p75 = scmp.ne.s32.totalorder %s66, %s67
    %p76 = scmp.eq.s32.totalorder %s14, 0
    %p77 = por %p75, %p76
    %p78 = scmp.ne.s32.totalorder %s66, %s67
    %p79 = scmp.eq.s32.totalorder %s15, 1
    %p80 = por %p78, %p79
    %p82 = scmp.ne.s32.totalorder %s67, %s81
    %p83 = scmp.eq.s32.totalorder %s15, 0
    %p84 = por %p82, %p83
    %s85 = ssub.s32 %s9, %s16
    %p86 = scmp.eq.s32.totalorder %s85, 0
    %s88 = sadd.s32 %s87, 1
    %s89 = scalar_select %p86, %s87, %s88
    %p92 = pneg %p86
    %p93 = scmp.eq.s32.totalorder %s9, 1
    %p94 = por %p92, %p93
    %p95 = scmp.ne.s32.totalorder %s87, %s90
    %p96 = scmp.eq.s32.totalorder %s9, 0
    %p97 = por %p95, %p96
    %p98 = scmp.ne.s32.totalorder %s87, %s90
    %p99 = scmp.eq.s32.totalorder %s14, 1
    %p100 = por %p98, %p99
    %p101 = scmp.ne.s32.totalorder %s90, %s91
    %p102 = scmp.eq.s32.totalorder %s14, 0
    %p103 = por %p101, %p102
    %p104 = scmp.ne.s32.totalorder %s90, %s91
    %p105 = scmp.eq.s32.totalorder %s15, 1
    %p106 = por %p104, %p105
    %p108 = scmp.ne.s32.totalorder %s91, %s107
    %p109 = scmp.eq.s32.totalorder %s15, 0
    %p110 = por %p108, %p109
    %p111 = scmp.le.s32.totalorder 1, %s9
    %p112 = scmp.lt.s32.totalorder %s9, 3
    %p113 = pnand %p111, %p112
    %p114 = pneg %p113
    // Predicated region
    $region9: #{forward.2} parent=5 // pred_check
      _
    $region10: #{forward.2} parent=5 // pred_check_branch
      %116 = sbr.rel (%p113) target = $region12
    $region11: #{forward.2} parent=5 // pred_region
      %s117 = ssub.s32 %s9, 1
      // Predicated region
      $region13: #{forward.2} parent=11 // pred_check
        %p118 = pneg %p56
      $region14: #{forward.2} parent=11 // pred_check_branch
        %120 = sbr.rel (%p118) target = $region16
      $region15: #{forward.2} parent=11 // pred_region
        _
      $region16: #{forward.2} parent=11 // pred_fallthru
        _
      // Predicated region
      $region17: #{forward.2} parent=11 // pred_check
        %p121 = pneg %p77
      $region18: #{forward.2} parent=11 // pred_check_branch
        %123 = sbr.rel (%p121) target = $region20
      $region19: #{forward.2} parent=11 // pred_region
        _
      $region20: #{forward.2} parent=11 // pred_fallthru
        _
    $region12: #{forward.2} parent=5 // pred_fallthru
      _
    %p124 = scmp.lt.s32.totalorder %s9, 2
    // Predicated region
    $region21: #{forward.2} parent=5 // pred_check
      %p125 = pneg %p124
    $region22: #{forward.2} parent=5 // pred_check_branch
      %127 = sbr.rel (%p125) target = $region24
    $region23: #{forward.2} parent=5 // pred_region
      // Predicated region
      $region25: #{forward.2} parent=23 // pred_check
        %p128 = pneg %p29
      $region26: #{forward.2} parent=23 // pred_check_branch
        %130 = sbr.rel (%p128) target = $region28
      $region27: #{forward.2} parent=23 // pred_region
        %s131 = smul.u32 32, %s9
        %p132 = scmp.lt.s32.totalorder %s131, 63
        %s133 = scalar_select %p132, %s131, 63
        %s134 = smul.addr %s133, 8
        %s135 = scalar_lea.vmem %s0, %s134
        %s136 = smul.u32 32, %s9
      $region28: #{forward.2} parent=23 // pred_fallthru
        _
    $region24: #{forward.2} parent=5 // pred_fallthru
      _
    %p137 = scmp.le.s32.totalorder 1, %s9
    %p138 = scmp.lt.s32.totalorder %s9, 3
    %p139 = pnand %p137, %p138
    %p140 = pneg %p139
    // Predicated region
    $region29: #{forward.2} parent=5 // pred_check
      _
    $region30: #{forward.2} parent=5 // pred_check_branch
      %142 = sbr.rel (%p139) target = $region32
    $region31: #{forward.2} parent=5 // pred_region
      %s143 = ssub.s32 %s9, 1
      %s144 = smul.u32 32, %s14
      %p145 = scmp.lt.s32.totalorder %s144, 63
      %s146 = scalar_select %p145, %s144, 63
      %s147 = smul.addr %s146, 8
      %s148 = scalar_lea.vmem %s0, %s147
      %p149 = pneg %p35
      %p150 = pneg %p32
      %p151 = pneg %p56
      %p152 = pneg %p53
      %p153 = pneg %p77
      %p154 = pneg %p74
      %p155 = pneg %p103
      %p156 = pneg %p100
      %s157 = smul.u32 32, %s14
      %p158 = scmp.lt.s32.totalorder %s157, 63
      %s159 = scalar_select %p158, %s157, 63
      %s160 = smul.addr %s159, 8
      %s161 = scalar_lea.vmem %s3, %s160
      %s162 = smul.u32 32, %s14
      %p163 = scmp.lt.s32.totalorder %s162, 63
      %s164 = scalar_select %p163, %s162, 63
      %s165 = smul.addr %s164, 8
      %s166 = scalar_lea.vmem %s0, %s165
      %s167 = smul.u32 32, %s14
      %s168 = smul.u32 32, %s14
      %p169 = scmp.lt.s32.totalorder %s168, 63
      %s170 = scalar_select %p169, %s168, 63
      %s171 = smul.addr %s170, 8
      %s172 = scalar_lea.vmem %s3, %s171
      %s173 = smul.u32 32, %s14
      %v174 = vld [vmem:[%s166] sm:$0xff]
      %v175 = vld [vmem:[%s166 + $0x8] sm:$0xff]
      %v176 = vld [vmem:[%s166 + $0x10] sm:$0xff]
      %v177 = vld [vmem:[%s166 + $0x18] sm:$0xff]
      %v178 = vld [vmem:[%s166 + $0x20] sm:$0xff]
      %v179 = vld [vmem:[%s166 + $0x28] sm:$0xff]
      %v180 = vld [vmem:[%s166 + $0x30] sm:$0xff]
      %v181 = vld [vmem:[%s166 + $0x38] sm:$0xff]
      %v182 = vld [vmem:[%s166 + $0x40] sm:$0xff]
      %v183 = vld [vmem:[%s166 + $0x48] sm:$0xff]
      %v184 = vld [vmem:[%s166 + $0x50] sm:$0xff]
      %v185 = vld [vmem:[%s166 + $0x58] sm:$0xff]
      %v186 = vld [vmem:[%s166 + $0x60] sm:$0xff]
      %v187 = vld [vmem:[%s166 + $0x68] sm:$0xff]
      %v188 = vld [vmem:[%s166 + $0x70] sm:$0xff]
      %v189 = vld [vmem:[%s166 + $0x78] sm:$0xff]
      %v190 = vld [vmem:[%s166 + $0x80] sm:$0xff]
      %v191 = vld [vmem:[%s166 + $0x88] sm:$0xff]
      %v192 = vld [vmem:[%s166 + $0x90] sm:$0xff]
      %v193 = vld [vmem:[%s166 + $0x98] sm:$0xff]
      %v194 = vld [vmem:[%s166 + $0xa0] sm:$0xff]
      %v195 = vld [vmem:[%s166 + $0xa8] sm:$0xff]
      %v196 = vld [vmem:[%s166 + $0xb0] sm:$0xff]
      %v197 = vld [vmem:[%s166 + $0xb8] sm:$0xff]
      %v198 = vld [vmem:[%s166 + $0xc0] sm:$0xff]
      %v199 = vld [vmem:[%s166 + $0xc8] sm:$0xff]
      %v200 = vld [vmem:[%s166 + $0xd0] sm:$0xff]
      %v201 = vld [vmem:[%s166 + $0xd8] sm:$0xff]
      %v202 = vld [vmem:[%s166 + $0xe0] sm:$0xff]
      %v203 = vld [vmem:[%s166 + $0xe8] sm:$0xff]
      %v204 = vld [vmem:[%s166 + $0xf0] sm:$0xff]
      %v205 = vld [vmem:[%s166 + $0xf8] sm:$0xff]
      %v206 = vld [vmem:[%s1] sm:$0xff]
      %v207 = vld [vmem:[%s1 + $0x8] sm:$0xff]
      %v208 = vld [vmem:[%s1 + $0x10] sm:$0xff]
      %v209 = vld [vmem:[%s1 + $0x18] sm:$0xff]
      %v210 = vld [vmem:[%s1 + $0x20] sm:$0xff]
      %v211 = vld [vmem:[%s1 + $0x28] sm:$0xff]
      %v212 = vld [vmem:[%s1 + $0x30] sm:$0xff]
      %v213 = vld [vmem:[%s1 + $0x38] sm:$0xff]
      %v214 = vld [vmem:[%s1 + $0x40] sm:$0xff]
      %v215 = vld [vmem:[%s1 + $0x48] sm:$0xff]
      %v216 = vld [vmem:[%s1 + $0x50] sm:$0xff]
      %v217 = vld [vmem:[%s1 + $0x58] sm:$0xff]
      %v218 = vld [vmem:[%s1 + $0x60] sm:$0xff]
      %v219 = vld [vmem:[%s1 + $0x68] sm:$0xff]
      %v220 = vld [vmem:[%s1 + $0x70] sm:$0xff]
      %v221 = vld [vmem:[%s1 + $0x78] sm:$0xff]
      %v222 = vld [vmem:[%s2] sm:$0x1]
      %v224 = vlaneseq
      %v225 = vshrl.u32 %v224, 7
      %v226 = vsub.s32 0, %v225
      %v227 = vrot.slane %v222, %v226
      %229 = vmatprep.subr.mxu0 0.0
      %230 = vmatpush1.msra.mxu0 %v221
      %231 = vmatprep.subr.mxu0 0.0
      %232 = vmatpush1.msra.mxu0 %v220
      %233 = vmatprep.subr.mxu0 0.0
      %234 = vmatpush1.msra.mxu0 %v219
      %235 = vmatprep.subr.mxu0 0.0
      %236 = vmatpush1.msra.mxu0 %v218
      %237 = vmatprep.subr.mxu0 0.0
      %238 = vmatpush1.msra.mxu0 %v217
      %239 = vmatprep.subr.mxu0 0.0
      %240 = vmatpush1.msra.mxu0 %v216
      %241 = vmatprep.subr.mxu0 0.0
      %242 = vmatpush1.msra.mxu0 %v215
      %243 = vmatprep.subr.mxu0 0.0
      %244 = vmatpush1.msra.mxu0 %v214
      %245 = vmatprep.subr.mxu0 0.0
      %246 = vmatpush1.msra.mxu0 %v213
      %247 = vmatprep.subr.mxu0 0.0
      %248 = vmatpush1.msra.mxu0 %v212
      %249 = vmatprep.subr.mxu0 0.0
      %250 = vmatpush1.msra.mxu0 %v211
      %251 = vmatprep.subr.mxu0 0.0
      %252 = vmatpush1.msra.mxu0 %v210
      %253 = vmatprep.subr.mxu0 0.0
      %254 = vmatpush1.msra.mxu0 %v209
      %255 = vmatprep.subr.mxu0 0.0
      %256 = vmatpush1.msra.mxu0 %v208
      %257 = vmatprep.subr.mxu0 0.0
      %258 = vmatpush1.msra.mxu0 %v207
      %259 = vmatprep.subr.mxu0 0.0
      %260 = vmatpush1.msra.mxu0 %v206
      %261 = vmatprep.subr.mxu0 0.0
      %262 = vmatpush2.msra.mxu0 0.0
      %263 = vmatprep.subr.mxu0 0.0
      %264 = vmatpush2.msra.mxu0 0.0
      %265 = vmatprep.subr.mxu0 0.0
      %266 = vmatpush2.msra.mxu0 0.0
      %267 = vmatprep.subr.mxu0 0.0
      %268 = vmatpush2.msra.mxu0 0.0
      %269 = vmatprep.subr.mxu0 0.0
      %270 = vmatpush2.msra.mxu0 0.0
      %271 = vmatprep.subr.mxu0 0.0
      %272 = vmatpush2.msra.mxu0 0.0
      %273 = vmatprep.subr.mxu0 0.0
      %274 = vmatpush2.msra.mxu0 0.0
      %275 = vmatprep.subr.mxu0 0.0
      %276 = vmatpush2.msra.mxu0 0.0
      %277 = vmatprep.subr.mxu0 0.0
      %278 = vmatpush2.msra.mxu0 0.0
      %279 = vmatprep.subr.mxu0 0.0
      %280 = vmatpush2.msra.mxu0 0.0
      %281 = vmatprep.subr.mxu0 0.0
      %282 = vmatpush2.msra.mxu0 0.0
      %283 = vmatprep.subr.mxu0 0.0
      %284 = vmatpush2.msra.mxu0 0.0
      %285 = vmatprep.subr.mxu0 0.0
      %286 = vmatpush2.msra.mxu0 0.0
      %287 = vmatprep.subr.mxu0 0.0
      %288 = vmatpush2.msra.mxu0 0.0
      %289 = vmatprep.subr.mxu0 0.0
      %290 = vmatpush2.msra.mxu0 0.0
      %291 = vmatprep.subr.mxu0 0.0
      %292 = vmatpush2.msra.mxu0 0.0
      %293 = vmatprep.mubr.f32.mxu0 0.0
      %294 = vmatmul.mubr.f32.gmra.mxu0 %v174
      %v295 = vpop.f32.mrf.mxu0
      %v296 = vadd.f32 %v227, %v295
      %v297 = vpop.f32.mrf.mxu0
      %298 = vmatprep.mubr.f32.mxu0 0.0
      %299 = vmatmul.mubr.f32.gmra.mxu0 %v175
      %v300 = vpop.f32.mrf.mxu0
      %v301 = vadd.f32 %v227, %v300
      %v302 = vpop.f32.mrf.mxu0
      %303 = vmatprep.mubr.f32.mxu0 0.0
      %304 = vmatmul.mubr.f32.gmra.mxu0 %v176
      %v305 = vpop.f32.mrf.mxu0
      %v306 = vadd.f32 %v227, %v305
      %v307 = vpop.f32.mrf.mxu0
      %308 = vmatprep.mubr.f32.mxu0 0.0
      %309 = vmatmul.mubr.f32.gmra.mxu0 %v177
      %v310 = vpop.f32.mrf.mxu0
      %v311 = vadd.f32 %v227, %v310
      %v312 = vpop.f32.mrf.mxu0
      %313 = vmatprep.mubr.f32.mxu0 0.0
      %314 = vmatmul.mubr.f32.gmra.mxu0 %v178
      %v315 = vpop.f32.mrf.mxu0
      %v316 = vadd.f32 %v227, %v315
      %v317 = vpop.f32.mrf.mxu0
      %318 = vmatprep.mubr.f32.mxu0 0.0
      %319 = vmatmul.mubr.f32.gmra.mxu0 %v179
      %v320 = vpop.f32.mrf.mxu0
      %v321 = vadd.f32 %v227, %v320
      %v322 = vpop.f32.mrf.mxu0
      %323 = vmatprep.mubr.f32.mxu0 0.0
      %324 = vmatmul.mubr.f32.gmra.mxu0 %v180
      %v325 = vpop.f32.mrf.mxu0
      %v326 = vadd.f32 %v227, %v325
      %v327 = vpop.f32.mrf.mxu0
      %328 = vmatprep.mubr.f32.mxu0 0.0
      %329 = vmatmul.mubr.f32.gmra.mxu0 %v181
      %v330 = vpop.f32.mrf.mxu0
      %v331 = vadd.f32 %v227, %v330
      %v332 = vpop.f32.mrf.mxu0
      %333 = vmatprep.mubr.f32.mxu0 0.0
      %334 = vmatmul.mubr.f32.gmra.mxu0 %v182
      %v335 = vpop.f32.mrf.mxu0
      %v336 = vadd.f32 %v227, %v335
      %v337 = vpop.f32.mrf.mxu0
      %338 = vmatprep.mubr.f32.mxu0 0.0
      %339 = vmatmul.mubr.f32.gmra.mxu0 %v183
      %v340 = vpop.f32.mrf.mxu0
      %v341 = vadd.f32 %v227, %v340
      %v342 = vpop.f32.mrf.mxu0
      %343 = vmatprep.mubr.f32.mxu0 0.0
      %344 = vmatmul.mubr.f32.gmra.mxu0 %v184
      %v345 = vpop.f32.mrf.mxu0
      %v346 = vadd.f32 %v227, %v345
      %v347 = vpop.f32.mrf.mxu0
      %348 = vmatprep.mubr.f32.mxu0 0.0
      %349 = vmatmul.mubr.f32.gmra.mxu0 %v185
      %v350 = vpop.f32.mrf.mxu0
      %v351 = vadd.f32 %v227, %v350
      %v352 = vpop.f32.mrf.mxu0
      %353 = vmatprep.mubr.f32.mxu0 0.0
      %354 = vmatmul.mubr.f32.gmra.mxu0 %v186
      %v355 = vpop.f32.mrf.mxu0
      %v356 = vadd.f32 %v227, %v355
      %v357 = vpop.f32.mrf.mxu0
      %358 = vmatprep.mubr.f32.mxu0 0.0
      %359 = vmatmul.mubr.f32.gmra.mxu0 %v187
      %v360 = vpop.f32.mrf.mxu0
      %v361 = vadd.f32 %v227, %v360
      %v362 = vpop.f32.mrf.mxu0
      %363 = vmatprep.mubr.f32.mxu0 0.0
      %364 = vmatmul.mubr.f32.gmra.mxu0 %v188
      %v365 = vpop.f32.mrf.mxu0
      %v366 = vadd.f32 %v227, %v365
      %v367 = vpop.f32.mrf.mxu0
      %368 = vmatprep.mubr.f32.mxu0 0.0
      %369 = vmatmul.mubr.f32.gmra.mxu0 %v189
      %v370 = vpop.f32.mrf.mxu0
      %v371 = vadd.f32 %v227, %v370
      %v372 = vpop.f32.mrf.mxu0
      %373 = vmatprep.mubr.f32.mxu0 0.0
      %374 = vmatmul.mubr.f32.gmra.mxu0 %v190
      %v375 = vpop.f32.mrf.mxu0
      %v376 = vadd.f32 %v227, %v375
      %v377 = vpop.f32.mrf.mxu0
      %378 = vmatprep.mubr.f32.mxu0 0.0
      %379 = vmatmul.mubr.f32.gmra.mxu0 %v191
      %v380 = vpop.f32.mrf.mxu0
      %v381 = vadd.f32 %v227, %v380
      %v382 = vpop.f32.mrf.mxu0
      %383 = vmatprep.mubr.f32.mxu0 0.0
      %384 = vmatmul.mubr.f32.gmra.mxu0 %v192
      %v385 = vpop.f32.mrf.mxu0
      %v386 = vadd.f32 %v227, %v385
      %v387 = vpop.f32.mrf.mxu0
      %388 = vmatprep.mubr.f32.mxu0 0.0
      %389 = vmatmul.mubr.f32.gmra.mxu0 %v193
      %v390 = vpop.f32.mrf.mxu0
      %v391 = vadd.f32 %v227, %v390
      %v392 = vpop.f32.mrf.mxu0
      %393 = vmatprep.mubr.f32.mxu0 0.0
      %394 = vmatmul.mubr.f32.gmra.mxu0 %v194
      %v395 = vpop.f32.mrf.mxu0
      %v396 = vadd.f32 %v227, %v395
      %v397 = vpop.f32.mrf.mxu0
      %398 = vmatprep.mubr.f32.mxu0 0.0
      %399 = vmatmul.mubr.f32.gmra.mxu0 %v195
      %v400 = vpop.f32.mrf.mxu0
      %v401 = vadd.f32 %v227, %v400
      %v402 = vpop.f32.mrf.mxu0
      %403 = vmatprep.mubr.f32.mxu0 0.0
      %404 = vmatmul.mubr.f32.gmra.mxu0 %v196
      %v405 = vpop.f32.mrf.mxu0
      %v406 = vadd.f32 %v227, %v405
      %v407 = vpop.f32.mrf.mxu0
      %408 = vmatprep.mubr.f32.mxu0 0.0
      %409 = vmatmul.mubr.f32.gmra.mxu0 %v197
      %v410 = vpop.f32.mrf.mxu0
      %v411 = vadd.f32 %v227, %v410
      %v412 = vpop.f32.mrf.mxu0
      %413 = vmatprep.mubr.f32.mxu0 0.0
      %414 = vmatmul.mubr.f32.gmra.mxu0 %v198
      %v415 = vpop.f32.mrf.mxu0
      %v416 = vadd.f32 %v227, %v415
      %v417 = vpop.f32.mrf.mxu0
      %418 = vmatprep.mubr.f32.mxu0 0.0
      %419 = vmatmul.mubr.f32.gmra.mxu0 %v199
      %v420 = vpop.f32.mrf.mxu0
      %v421 = vadd.f32 %v227, %v420
      %v422 = vpop.f32.mrf.mxu0
      %423 = vmatprep.mubr.f32.mxu0 0.0
      %424 = vmatmul.mubr.f32.gmra.mxu0 %v200
      %v425 = vpop.f32.mrf.mxu0
      %v426 = vadd.f32 %v227, %v425
      %v427 = vpop.f32.mrf.mxu0
      %428 = vmatprep.mubr.f32.mxu0 0.0
      %429 = vmatmul.mubr.f32.gmra.mxu0 %v201
      %v430 = vpop.f32.mrf.mxu0
      %v431 = vadd.f32 %v227, %v430
      %v432 = vpop.f32.mrf.mxu0
      %433 = vmatprep.mubr.f32.mxu0 0.0
      %434 = vmatmul.mubr.f32.gmra.mxu0 %v202
      %v435 = vpop.f32.mrf.mxu0
      %v436 = vadd.f32 %v227, %v435
      %v437 = vpop.f32.mrf.mxu0
      %438 = vmatprep.mubr.f32.mxu0 0.0
      %439 = vmatmul.mubr.f32.gmra.mxu0 %v203
      %v440 = vpop.f32.mrf.mxu0
      %v441 = vadd.f32 %v227, %v440
      %v442 = vpop.f32.mrf.mxu0
      %443 = vmatprep.mubr.f32.mxu0 0.0
      %444 = vmatmul.mubr.f32.gmra.mxu0 %v204
      %v445 = vpop.f32.mrf.mxu0
      %v446 = vadd.f32 %v227, %v445
      %v447 = vpop.f32.mrf.mxu0
      %448 = vmatprep.mubr.f32.mxu0 0.0
      %449 = vmatmul.mubr.f32.gmra.mxu0 %v205
      %v450 = vpop.f32.mrf.mxu0
      %v451 = vadd.f32 %v227, %v450
      %v452 = vpop.f32.mrf.mxu0
      %453 = vdwg.mxu0
      %v454 = vmax.f32 %v296, 0.0
      %v455 = vmax.f32 %v301, 0.0
      %v456 = vmax.f32 %v306, 0.0
      %v457 = vmax.f32 %v311, 0.0
      %v458 = vmax.f32 %v316, 0.0
      %v459 = vmax.f32 %v321, 0.0
      %v460 = vmax.f32 %v326, 0.0
      %v461 = vmax.f32 %v331, 0.0
      %v462 = vmax.f32 %v336, 0.0
      %v463 = vmax.f32 %v341, 0.0
      %v464 = vmax.f32 %v346, 0.0
      %v465 = vmax.f32 %v351, 0.0
      %v466 = vmax.f32 %v356, 0.0
      %v467 = vmax.f32 %v361, 0.0
      %v468 = vmax.f32 %v366, 0.0
      %v469 = vmax.f32 %v371, 0.0
      %v470 = vmax.f32 %v376, 0.0
      %v471 = vmax.f32 %v381, 0.0
      %v472 = vmax.f32 %v386, 0.0
      %v473 = vmax.f32 %v391, 0.0
      %v474 = vmax.f32 %v396, 0.0
      %v475 = vmax.f32 %v401, 0.0
      %v476 = vmax.f32 %v406, 0.0
      %v477 = vmax.f32 %v411, 0.0
      %v478 = vmax.f32 %v416, 0.0
      %v479 = vmax.f32 %v421, 0.0
      %v480 = vmax.f32 %v426, 0.0
      %v481 = vmax.f32 %v431, 0.0
      %v482 = vmax.f32 %v436, 0.0
      %v483 = vmax.f32 %v441, 0.0
      %v484 = vmax.f32 %v446, 0.0
      %v485 = vmax.f32 %v451, 0.0
      %486 = vst [vmem:[%s172] sm:$0xff] %v454
      %487 = vst [vmem:[%s172 + $0x8] sm:$0xff] %v455
      %488 = vst [vmem:[%s172 + $0x10] sm:$0xff] %v456
      %489 = vst [vmem:[%s172 + $0x18] sm:$0xff] %v457
      %490 = vst [vmem:[%s172 + $0x20] sm:$0xff] %v458
      %491 = vst [vmem:[%s172 + $0x28] sm:$0xff] %v459
      %492 = vst [vmem:[%s172 + $0x30] sm:$0xff] %v460
      %493 = vst [vmem:[%s172 + $0x38] sm:$0xff] %v461
      %494 = vst [vmem:[%s172 + $0x40] sm:$0xff] %v462
      %495 = vst [vmem:[%s172 + $0x48] sm:$0xff] %v463
      %496 = vst [vmem:[%s172 + $0x50] sm:$0xff] %v464
      %497 = vst [vmem:[%s172 + $0x58] sm:$0xff] %v465
      %498 = vst [vmem:[%s172 + $0x60] sm:$0xff] %v466
      %499 = vst [vmem:[%s172 + $0x68] sm:$0xff] %v467
      %500 = vst [vmem:[%s172 + $0x70] sm:$0xff] %v468
      %501 = vst [vmem:[%s172 + $0x78] sm:$0xff] %v469
      %502 = vst [vmem:[%s172 + $0x80] sm:$0xff] %v470
      %503 = vst [vmem:[%s172 + $0x88] sm:$0xff] %v471
      %504 = vst [vmem:[%s172 + $0x90] sm:$0xff] %v472
      %505 = vst [vmem:[%s172 + $0x98] sm:$0xff] %v473
      %506 = vst [vmem:[%s172 + $0xa0] sm:$0xff] %v474
      %507 = vst [vmem:[%s172 + $0xa8] sm:$0xff] %v475
      %508 = vst [vmem:[%s172 + $0xb0] sm:$0xff] %v476
      %509 = vst [vmem:[%s172 + $0xb8] sm:$0xff] %v477
      %510 = vst [vmem:[%s172 + $0xc0] sm:$0xff] %v478
      %511 = vst [vmem:[%s172 + $0xc8] sm:$0xff] %v479
      %512 = vst [vmem:[%s172 + $0xd0] sm:$0xff] %v480
      %513 = vst [vmem:[%s172 + $0xd8] sm:$0xff] %v481
      %514 = vst [vmem:[%s172 + $0xe0] sm:$0xff] %v482
      %515 = vst [vmem:[%s172 + $0xe8] sm:$0xff] %v483
      %516 = vst [vmem:[%s172 + $0xf0] sm:$0xff] %v484
      %517 = vst [vmem:[%s172 + $0xf8] sm:$0xff] %v485
      %s518 = smul.u32 32, %s14
      %p519 = scmp.lt.s32.totalorder %s518, 63
      %s520 = scalar_select %p519, %s518, 63
      %s521 = smul.addr %s520, 8
      %s522 = scalar_lea.vmem %s3, %s521
      // Predicated region
      $region33: #{forward.2} parent=31 // pred_check
        %p523 = pneg %p100
      $region34: #{forward.2} parent=31 // pred_check_branch
        %525 = sbr.rel (%p523) target = $region36
      $region35: #{forward.2} parent=31 // pred_region
        %s526 = smul.u32 32, %s14
      $region36: #{forward.2} parent=31 // pred_fallthru
        _
    $region32: #{forward.2} parent=5 // pred_fallthru
      _
    %p527 = scmp.le.s32.totalorder 2, %s9
    // Predicated region
    $region37: #{forward.2} parent=5 // pred_check
      %p528 = pneg %p527
    $region38: #{forward.2} parent=5 // pred_check_branch
      %530 = sbr.rel (%p528) target = $region40
    $region39: #{forward.2} parent=5 // pred_region
      %s531 = ssub.s32 %s9, 2
      // Predicated region
      $region41: #{forward.2} parent=39 // pred_check
        %p532 = pneg %p106
      $region42: #{forward.2} parent=39 // pred_check_branch
        %534 = sbr.rel (%p532) target = $region44
      $region43: #{forward.2} parent=39 // pred_region
        %s535 = smul.u32 32, %s15
        %p536 = scmp.lt.s32.totalorder %s535, 63
        %s537 = scalar_select %p536, %s535, 63
        %s538 = smul.addr %s537, 8
        %s539 = scalar_lea.vmem %s3, %s538
      $region44: #{forward.2} parent=39 // pred_fallthru
        _
    $region40: #{forward.2} parent=5 // pred_fallthru
      _
  $region6: #{forward.2} parent=0 // loop_footer
    %s13 = sadd.s32 1, %s9
  $region7: #{forward.2} parent=0 // loop_footer_branch
    %8 = sbr.rel target = $region3
  $region8: #{forward.2} parent=0 // loop_exit
    _

// kernel: forward.3
$region0: #{forward.3}
  #allocation0 [shape = 'u32[]', space=smem, size = 0x4, offset = 0x4, fixed_abs, tag = 'smem constant byte address 0x4 - core index']
  #allocation1 [shape = 'u32[144,128]{1,0:T(1,128)}', space=vmem, size = 0x12000, scoped, tag = 'internal scratch']
  %s0 = inlined_call_operand.vmem [shape: f32[512,128], index: 0, kind: input, shape index: {}]
  %s1 = inlined_call_operand.vmem [shape: f32[128,128], index: 1, kind: input, shape index: {}]
  %s2 = inlined_call_operand.vmem [shape: f32[1,128], index: 2, kind: input, shape index: {}]
  %s3 = inlined_call_operand.vmem [shape: f32[512,128], index: 3, kind: input, shape index: {}]
  %s4 = inlined_call_operand.vmem [shape: f32[512,128], index: 4, kind: output, shape index: {}]
  %s5 = sld [smem:[#allocation0]]
  $region49: #{forward.3} parent=0
    _
  %s7 = ssub.s32 1, %s5
  %s8 = scalar_select 0, %s7, %s5
  loop: start=0, step=1, limit=4
  $region2: #{forward.3} parent=0 // loop_pre_header
    _
  $region3: #{forward.3} parent=0 // loop_header
    %s10 = sphi 0, %s14
    %p11 = scmp.ge.s32.totalorder %s10, 4
    %s20 = sphi 0, %s22
    %s23 = sphi 0, %s20
    %s24 = sphi 0, %s23
    %s40 = sphi 0, %s24
    %s44 = sphi 0, %s44
    %s46 = sphi 0, %s44
    %s47 = sphi 0, %s46
    %s61 = sphi 0, %s47
    %s65 = sphi 0, %s65
    %s67 = sphi 0, %s65
    %s68 = sphi 0, %s67
    %s82 = sphi 0, %s68
    %s88 = sphi 0, %s90
    %s91 = sphi 0, %s88
    %s92 = sphi 0, %s91
    %s108 = sphi 0, %s92
    %s114 = sphi 0, %s116
    %s117 = sphi 0, %s114
    %s118 = sphi 0, %s117
    %s134 = sphi 0, %s118
  $region4: #{forward.3} parent=0 // loop_header_branch
    %13 = sbr.rel (%p11) target = $region8
  $region5: #{forward.3} parent=0 // loop_body
    %s15 = ssub.s32 %s10, 1
    %s16 = ssub.s32 %s10, 2
    %s17 = sadd.s32 %s10, 1
    %s18 = ssub.s32 %s10, %s17
    %p19 = scmp.eq.s32.totalorder %s18, 0
    %s21 = sadd.s32 %s20, 1
    %s22 = scalar_select %p19, %s20, %s21
    %p25 = pneg %p19
    %p26 = scmp.eq.s32.totalorder %s10, 1
    %p27 = por %p25, %p26
    %p28 = scmp.ne.s32.totalorder %s20, %s23
    %p29 = scmp.eq.s32.totalorder %s10, 0
    %p30 = por %p28, %p29
    %p31 = scmp.ne.s32.totalorder %s20, %s23
    %p32 = scmp.eq.s32.totalorder %s15, 1
    %p33 = por %p31, %p32
    %p34 = scmp.ne.s32.totalorder %s23, %s24
    %p35 = scmp.eq.s32.totalorder %s15, 0
    %p36 = por %p34, %p35
    %p37 = scmp.ne.s32.totalorder %s23, %s24
    %p38 = scmp.eq.s32.totalorder %s16, 1
    %p39 = por %p37, %p38
    %p41 = scmp.ne.s32.totalorder %s24, %s40
    %p42 = scmp.eq.s32.totalorder %s16, 0
    %p43 = por %p41, %p42
    %s45 = sadd.s32 %s44, 1
    %p48 = scmp.eq.s32.totalorder %s10, 1
    %p49 = scmp.ne.s32.totalorder %s44, %s46
    %p50 = scmp.eq.s32.totalorder %s10, 0
    %p51 = por %p49, %p50
    %p52 = scmp.ne.s32.totalorder %s44, %s46
    %p53 = scmp.eq.s32.totalorder %s15, 1
    %p54 = por %p52, %p53
    %p55 = scmp.ne.s32.totalorder %s46, %s47
    %p56 = scmp.eq.s32.totalorder %s15, 0
    %p57 = por %p55, %p56
    %p58 = scmp.ne.s32.totalorder %s46, %s47
    %p59 = scmp.eq.s32.totalorder %s16, 1
    %p60 = por %p58, %p59
    %p62 = scmp.ne.s32.totalorder %s47, %s61
    %p63 = scmp.eq.s32.totalorder %s16, 0
    %p64 = por %p62, %p63
    %s66 = sadd.s32 %s65, 1
    %p69 = scmp.eq.s32.totalorder %s10, 1
    %p70 = scmp.ne.s32.totalorder %s65, %s67
    %p71 = scmp.eq.s32.totalorder %s10, 0
    %p72 = por %p70, %p71
    %p73 = scmp.ne.s32.totalorder %s65, %s67
    %p74 = scmp.eq.s32.totalorder %s15, 1
    %p75 = por %p73, %p74
    %p76 = scmp.ne.s32.totalorder %s67, %s68
    %p77 = scmp.eq.s32.totalorder %s15, 0
    %p78 = por %p76, %p77
    %p79 = scmp.ne.s32.totalorder %s67, %s68
    %p80 = scmp.eq.s32.totalorder %s16, 1
    %p81 = por %p79, %p80
    %p83 = scmp.ne.s32.totalorder %s68, %s82
    %p84 = scmp.eq.s32.totalorder %s16, 0
    %p85 = por %p83, %p84
    %s86 = ssub.s32 %s10, %s17
    %p87 = scmp.eq.s32.totalorder %s86, 0
    %s89 = sadd.s32 %s88, 1
    %s90 = scalar_select %p87, %s88, %s89
    %p93 = pneg %p87
    %p94 = scmp.eq.s32.totalorder %s10, 1
    %p95 = por %p93, %p94
    %p96 = scmp.ne.s32.totalorder %s88, %s91
    %p97 = scmp.eq.s32.totalorder %s10, 0
    %p98 = por %p96, %p97
    %p99 = scmp.ne.s32.totalorder %s88, %s91
    %p100 = scmp.eq.s32.totalorder %s15, 1
    %p101 = por %p99, %p100
    %p102 = scmp.ne.s32.totalorder %s91, %s92
    %p103 = scmp.eq.s32.totalorder %s15, 0
    %p104 = por %p102, %p103
    %p105 = scmp.ne.s32.totalorder %s91, %s92
    %p106 = scmp.eq.s32.totalorder %s16, 1
    %p107 = por %p105, %p106
    %p109 = scmp.ne.s32.totalorder %s92, %s108
    %p110 = scmp.eq.s32.totalorder %s16, 0
    %p111 = por %p109, %p110
    %s112 = ssub.s32 %s10, %s17
    %p113 = scmp.eq.s32.totalorder %s112, 0
    %s115 = sadd.s32 %s114, 1
    %s116 = scalar_select %p113, %s114, %s115
    %p119 = pneg %p113
    %p120 = scmp.eq.s32.totalorder %s10, 1
    %p121 = por %p119, %p120
    %p122 = scmp.ne.s32.totalorder %s114, %s117
    %p123 = scmp.eq.s32.totalorder %s10, 0
    %p124 = por %p122, %p123
    %p125 = scmp.ne.s32.totalorder %s114, %s117
    %p126 = scmp.eq.s32.totalorder %s15, 1
    %p127 = por %p125, %p126
    %p128 = scmp.ne.s32.totalorder %s117, %s118
    %p129 = scmp.eq.s32.totalorder %s15, 0
    %p130 = por %p128, %p129
    %p131 = scmp.ne.s32.totalorder %s117, %s118
    %p132 = scmp.eq.s32.totalorder %s16, 1
    %p133 = por %p131, %p132
    %p135 = scmp.ne.s32.totalorder %s118, %s134
    %p136 = scmp.eq.s32.totalorder %s16, 0
    %p137 = por %p135, %p136
    %p138 = scmp.le.s32.totalorder 1, %s10
    %p139 = scmp.lt.s32.totalorder %s10, 3
    %p140 = pnand %p138, %p139
    %p141 = pneg %p140
    // Predicated region
    $region9: #{forward.3} parent=5 // pred_check
      _
    $region10: #{forward.3} parent=5 // pred_check_branch
      %143 = sbr.rel (%p140) target = $region12
    $region11: #{forward.3} parent=5 // pred_region
      %s144 = ssub.s32 %s10, 1
      // Predicated region
      $region13: #{forward.3} parent=11 // pred_check
        %p145 = pneg %p57
      $region14: #{forward.3} parent=11 // pred_check_branch
        %147 = sbr.rel (%p145) target = $region16
      $region15: #{forward.3} parent=11 // pred_region
        _
      $region16: #{forward.3} parent=11 // pred_fallthru
        _
      // Predicated region
      $region17: #{forward.3} parent=11 // pred_check
        %p148 = pneg %p78
      $region18: #{forward.3} parent=11 // pred_check_branch
        %150 = sbr.rel (%p148) target = $region20
      $region19: #{forward.3} parent=11 // pred_region
        _
      $region20: #{forward.3} parent=11 // pred_fallthru
        _
    $region12: #{forward.3} parent=5 // pred_fallthru
      _
    %p151 = scmp.lt.s32.totalorder %s10, 2
    // Predicated region
    $region21: #{forward.3} parent=5 // pred_check
      %p152 = pneg %p151
    $region22: #{forward.3} parent=5 // pred_check_branch
      %154 = sbr.rel (%p152) target = $region24
    $region23: #{forward.3} parent=5 // pred_region
      // Predicated region
      $region25: #{forward.3} parent=23 // pred_check
        %p155 = pneg %p30
      $region26: #{forward.3} parent=23 // pred_check_branch
        %157 = sbr.rel (%p155) target = $region28
      $region27: #{forward.3} parent=23 // pred_region
        %s158 = smul.u32 32, %s10
        %p159 = scmp.lt.s32.totalorder %s158, 63
        %s160 = scalar_select %p159, %s158, 63
        %s161 = smul.addr %s160, 8
        %s162 = scalar_lea.vmem %s0, %s161
        %s163 = smul.u32 32, %s10
      $region28: #{forward.3} parent=23 // pred_fallthru
        _
      // Predicated region
      $region29: #{forward.3} parent=23 // pred_check
        %p164 = pneg %p98
      $region30: #{forward.3} parent=23 // pred_check_branch
        %166 = sbr.rel (%p164) target = $region32
      $region31: #{forward.3} parent=23 // pred_region
        %s167 = smul.u32 32, %s10
        %p168 = scmp.lt.s32.totalorder %s167, 63
        %s169 = scalar_select %p168, %s167, 63
        %s170 = smul.addr %s169, 8
        %s171 = scalar_lea.vmem %s3, %s170
        %s172 = smul.u32 32, %s10
      $region32: #{forward.3} parent=23 // pred_fallthru
        _
    $region24: #{forward.3} parent=5 // pred_fallthru
      _
    %p173 = scmp.le.s32.totalorder 1, %s10
    %p174 = scmp.lt.s32.totalorder %s10, 3
    %p175 = pnand %p173, %p174
    %p176 = pneg %p175
    // Predicated region
    $region33: #{forward.3} parent=5 // pred_check
      _
    $region34: #{forward.3} parent=5 // pred_check_branch
      %178 = sbr.rel (%p175) target = $region36
    $region35: #{forward.3} parent=5 // pred_region
      %s179 = ssub.s32 %s10, 1
      %s180 = smul.u32 32, %s15
      %p181 = scmp.lt.s32.totalorder %s180, 63
      %s182 = scalar_select %p181, %s180, 63
      %s183 = smul.addr %s182, 8
      %s184 = scalar_lea.vmem %s0, %s183
      %p185 = pneg %p36
      %p186 = pneg %p33
      %p187 = pneg %p57
      %p188 = pneg %p54
      %p189 = pneg %p78
      %p190 = pneg %p75
      %s191 = smul.u32 32, %s15
      %p192 = scmp.lt.s32.totalorder %s191, 63
      %s193 = scalar_select %p192, %s191, 63
      %s194 = smul.addr %s193, 8
      %s195 = scalar_lea.vmem %s3, %s194
      %p196 = pneg %p104
      %p197 = pneg %p101
      %p198 = pneg %p130
      %p199 = pneg %p127
      %s200 = smul.u32 32, %s15
      %p201 = scmp.lt.s32.totalorder %s200, 63
      %s202 = scalar_select %p201, %s200, 63
      %s203 = smul.addr %s202, 8
      %s204 = scalar_lea.vmem %s4, %s203
      %s205 = smul.u32 32, %s15
      %p206 = scmp.lt.s32.totalorder %s205, 63
      %s207 = scalar_select %p206, %s205, 63
      %s208 = smul.addr %s207, 8
      %s209 = scalar_lea.vmem %s0, %s208
      %s210 = smul.u32 32, %s15
      %s211 = smul.u32 32, %s15
      %p212 = scmp.lt.s32.totalorder %s211, 63
      %s213 = scalar_select %p212, %s211, 63
      %s214 = smul.addr %s213, 8
      %s215 = scalar_lea.vmem %s3, %s214
      %s216 = smul.u32 32, %s15
      %s217 = smul.u32 32, %s15
      %p218 = scmp.lt.s32.totalorder %s217, 63
      %s219 = scalar_select %p218, %s217, 63
      %s220 = smul.addr %s219, 8
      %s221 = scalar_lea.vmem %s4, %s220
      %s222 = smul.u32 32, %s15
      %v223 = vld [vmem:[%s209] sm:$0xff]
      %v224 = vld [vmem:[%s209 + $0x8] sm:$0xff]
      %v225 = vld [vmem:[%s209 + $0x10] sm:$0xff]
      %v226 = vld [vmem:[%s209 + $0x18] sm:$0xff]
      %v227 = vld [vmem:[%s209 + $0x20] sm:$0xff]
      %v228 = vld [vmem:[%s209 + $0x28] sm:$0xff]
      %v229 = vld [vmem:[%s209 + $0x30] sm:$0xff]
      %v230 = vld [vmem:[%s209 + $0x38] sm:$0xff]
      %v231 = vld [vmem:[%s209 + $0x40] sm:$0xff]
      %v232 = vld [vmem:[%s209 + $0x48] sm:$0xff]
      %v233 = vld [vmem:[%s209 + $0x50] sm:$0xff]
      %v234 = vld [vmem:[%s209 + $0x58] sm:$0xff]
      %v235 = vld [vmem:[%s209 + $0x60] sm:$0xff]
      %v236 = vld [vmem:[%s209 + $0x68] sm:$0xff]
      %v237 = vld [vmem:[%s209 + $0x70] sm:$0xff]
      %v238 = vld [vmem:[%s209 + $0x78] sm:$0xff]
      %v239 = vld [vmem:[%s209 + $0x80] sm:$0xff]
      %v240 = vld [vmem:[%s209 + $0x88] sm:$0xff]
      %v241 = vld [vmem:[%s209 + $0x90] sm:$0xff]
      %v242 = vld [vmem:[%s209 + $0x98] sm:$0xff]
      %v243 = vld [vmem:[%s209 + $0xa0] sm:$0xff]
      %v244 = vld [vmem:[%s209 + $0xa8] sm:$0xff]
      %v245 = vld [vmem:[%s209 + $0xb0] sm:$0xff]
      %v246 = vld [vmem:[%s209 + $0xb8] sm:$0xff]
      %v247 = vld [vmem:[%s209 + $0xc0] sm:$0xff]
      %v248 = vld [vmem:[%s209 + $0xc8] sm:$0xff]
      %v249 = vld [vmem:[%s209 + $0xd0] sm:$0xff]
      %v250 = vld [vmem:[%s209 + $0xd8] sm:$0xff]
      %v251 = vld [vmem:[%s209 + $0xe0] sm:$0xff]
      %v252 = vld [vmem:[%s209 + $0xe8] sm:$0xff]
      %v253 = vld [vmem:[%s209 + $0xf0] sm:$0xff]
      %v254 = vld [vmem:[%s209 + $0xf8] sm:$0xff]
      %v255 = vld [vmem:[%s1] sm:$0xff]
      %v256 = vld [vmem:[%s1 + $0x8] sm:$0xff]
      %v257 = vld [vmem:[%s1 + $0x10] sm:$0xff]
      %v258 = vld [vmem:[%s1 + $0x18] sm:$0xff]
      %v259 = vld [vmem:[%s1 + $0x20] sm:$0xff]
      %v260 = vld [vmem:[%s1 + $0x28] sm:$0xff]
      %v261 = vld [vmem:[%s1 + $0x30] sm:$0xff]
      %v262 = vld [vmem:[%s1 + $0x38] sm:$0xff]
      %v263 = vld [vmem:[%s1 + $0x40] sm:$0xff]
      %v264 = vld [vmem:[%s1 + $0x48] sm:$0xff]
      %v265 = vld [vmem:[%s1 + $0x50] sm:$0xff]
      %v266 = vld [vmem:[%s1 + $0x58] sm:$0xff]
      %v267 = vld [vmem:[%s1 + $0x60] sm:$0xff]
      %v268 = vld [vmem:[%s1 + $0x68] sm:$0xff]
      %v269 = vld [vmem:[%s1 + $0x70] sm:$0xff]
      %v270 = vld [vmem:[%s1 + $0x78] sm:$0xff]
      %v271 = vld [vmem:[%s2] sm:$0x1]
      %v273 = vlaneseq
      %v274 = vshrl.u32 %v273, 7
      %v275 = vsub.s32 0, %v274
      %v276 = vrot.slane %v271, %v275
      %278 = vmatprep.subr.mxu0 0.0
      %279 = vmatpush1.msra.mxu0 %v270
      %280 = vmatprep.subr.mxu0 0.0
      %281 = vmatpush1.msra.mxu0 %v269
      %282 = vmatprep.subr.mxu0 0.0
      %283 = vmatpush1.msra.mxu0 %v268
      %284 = vmatprep.subr.mxu0 0.0
      %285 = vmatpush1.msra.mxu0 %v267
      %286 = vmatprep.subr.mxu0 0.0
      %287 = vmatpush1.msra.mxu0 %v266
      %288 = vmatprep.subr.mxu0 0.0
      %289 = vmatpush1.msra.mxu0 %v265
      %290 = vmatprep.subr.mxu0 0.0
      %291 = vmatpush1.msra.mxu0 %v264
      %292 = vmatprep.subr.mxu0 0.0
      %293 = vmatpush1.msra.mxu0 %v263
      %294 = vmatprep.subr.mxu0 0.0
      %295 = vmatpush1.msra.mxu0 %v262
      %296 = vmatprep.subr.mxu0 0.0
      %297 = vmatpush1.msra.mxu0 %v261
      %298 = vmatprep.subr.mxu0 0.0
      %299 = vmatpush1.msra.mxu0 %v260
      %300 = vmatprep.subr.mxu0 0.0
      %301 = vmatpush1.msra.mxu0 %v259
      %302 = vmatprep.subr.mxu0 0.0
      %303 = vmatpush1.msra.mxu0 %v258
      %304 = vmatprep.subr.mxu0 0.0
      %305 = vmatpush1.msra.mxu0 %v257
      %306 = vmatprep.subr.mxu0 0.0
      %307 = vmatpush1.msra.mxu0 %v256
      %308 = vmatprep.subr.mxu0 0.0
      %309 = vmatpush1.msra.mxu0 %v255
      %310 = vmatprep.subr.mxu0 0.0
      %311 = vmatpush2.msra.mxu0 0.0
      %312 = vmatprep.subr.mxu0 0.0
      %313 = vmatpush2.msra.mxu0 0.0
      %314 = vmatprep.subr.mxu0 0.0
      %315 = vmatpush2.msra.mxu0 0.0
      %316 = vmatprep.subr.mxu0 0.0
      %317 = vmatpush2.msra.mxu0 0.0
      %318 = vmatprep.subr.mxu0 0.0
      %319 = vmatpush2.msra.mxu0 0.0
      %320 = vmatprep.subr.mxu0 0.0
      %321 = vmatpush2.msra.mxu0 0.0
      %322 = vmatprep.subr.mxu0 0.0
      %323 = vmatpush2.msra.mxu0 0.0
      %324 = vmatprep.subr.mxu0 0.0
      %325 = vmatpush2.msra.mxu0 0.0
      %326 = vmatprep.subr.mxu0 0.0
      %327 = vmatpush2.msra.mxu0 0.0
      %328 = vmatprep.subr.mxu0 0.0
      %329 = vmatpush2.msra.mxu0 0.0
      %330 = vmatprep.subr.mxu0 0.0
      %331 = vmatpush2.msra.mxu0 0.0
      %332 = vmatprep.subr.mxu0 0.0
      %333 = vmatpush2.msra.mxu0 0.0
      %334 = vmatprep.subr.mxu0 0.0
      %335 = vmatpush2.msra.mxu0 0.0
      %336 = vmatprep.subr.mxu0 0.0
      %337 = vmatpush2.msra.mxu0 0.0
      %338 = vmatprep.subr.mxu0 0.0
      %339 = vmatpush2.msra.mxu0 0.0
      %340 = vmatprep.subr.mxu0 0.0
      %341 = vmatpush2.msra.mxu0 0.0
      %342 = vmatprep.mubr.f32.mxu0 0.0
      %343 = vmatmul.mubr.f32.gmra.mxu0 %v223
      %v344 = vpop.f32.mrf.mxu0
      %v345 = vadd.f32 %v276, %v344
      %v346 = vpop.f32.mrf.mxu0
      %347 = vmatprep.mubr.f32.mxu0 0.0
      %348 = vmatmul.mubr.f32.gmra.mxu0 %v224
      %v349 = vpop.f32.mrf.mxu0
      %v350 = vadd.f32 %v276, %v349
      %v351 = vpop.f32.mrf.mxu0
      %352 = vmatprep.mubr.f32.mxu0 0.0
      %353 = vmatmul.mubr.f32.gmra.mxu0 %v225
      %v354 = vpop.f32.mrf.mxu0
      %v355 = vadd.f32 %v276, %v354
      %v356 = vpop.f32.mrf.mxu0
      %357 = vmatprep.mubr.f32.mxu0 0.0
      %358 = vmatmul.mubr.f32.gmra.mxu0 %v226
      %v359 = vpop.f32.mrf.mxu0
      %v360 = vadd.f32 %v276, %v359
      %v361 = vpop.f32.mrf.mxu0
      %362 = vmatprep.mubr.f32.mxu0 0.0
      %363 = vmatmul.mubr.f32.gmra.mxu0 %v227
      %v364 = vpop.f32.mrf.mxu0
      %v365 = vadd.f32 %v276, %v364
      %v366 = vpop.f32.mrf.mxu0
      %367 = vmatprep.mubr.f32.mxu0 0.0
      %368 = vmatmul.mubr.f32.gmra.mxu0 %v228
      %v369 = vpop.f32.mrf.mxu0
      %v370 = vadd.f32 %v276, %v369
      %v371 = vpop.f32.mrf.mxu0
      %372 = vmatprep.mubr.f32.mxu0 0.0
      %373 = vmatmul.mubr.f32.gmra.mxu0 %v229
      %v374 = vpop.f32.mrf.mxu0
      %v375 = vadd.f32 %v276, %v374
      %v376 = vpop.f32.mrf.mxu0
      %377 = vmatprep.mubr.f32.mxu0 0.0
      %378 = vmatmul.mubr.f32.gmra.mxu0 %v230
      %v379 = vpop.f32.mrf.mxu0
      %v380 = vadd.f32 %v276, %v379
      %v381 = vpop.f32.mrf.mxu0
      %382 = vmatprep.mubr.f32.mxu0 0.0
      %383 = vmatmul.mubr.f32.gmra.mxu0 %v231
      %v384 = vpop.f32.mrf.mxu0
      %v385 = vadd.f32 %v276, %v384
      %v386 = vpop.f32.mrf.mxu0
      %387 = vmatprep.mubr.f32.mxu0 0.0
      %388 = vmatmul.mubr.f32.gmra.mxu0 %v232
      %v389 = vpop.f32.mrf.mxu0
      %v390 = vadd.f32 %v276, %v389
      %v391 = vpop.f32.mrf.mxu0
      %392 = vmatprep.mubr.f32.mxu0 0.0
      %393 = vmatmul.mubr.f32.gmra.mxu0 %v233
      %v394 = vpop.f32.mrf.mxu0
      %v395 = vadd.f32 %v276, %v394
      %v396 = vpop.f32.mrf.mxu0
      %397 = vmatprep.mubr.f32.mxu0 0.0
      %398 = vmatmul.mubr.f32.gmra.mxu0 %v234
      %v399 = vpop.f32.mrf.mxu0
      %v400 = vadd.f32 %v276, %v399
      %v401 = vpop.f32.mrf.mxu0
      %402 = vmatprep.mubr.f32.mxu0 0.0
      %403 = vmatmul.mubr.f32.gmra.mxu0 %v235
      %v404 = vpop.f32.mrf.mxu0
      %v405 = vadd.f32 %v276, %v404
      %v406 = vpop.f32.mrf.mxu0
      %407 = vmatprep.mubr.f32.mxu0 0.0
      %408 = vmatmul.mubr.f32.gmra.mxu0 %v236
      %v409 = vpop.f32.mrf.mxu0
      %v410 = vadd.f32 %v276, %v409
      %v411 = vpop.f32.mrf.mxu0
      %412 = vmatprep.mubr.f32.mxu0 0.0
      %413 = vmatmul.mubr.f32.gmra.mxu0 %v237
      %v414 = vpop.f32.mrf.mxu0
      %v415 = vadd.f32 %v276, %v414
      %v416 = vpop.f32.mrf.mxu0
      %417 = vmatprep.mubr.f32.mxu0 0.0
      %418 = vmatmul.mubr.f32.gmra.mxu0 %v238
      %v419 = vpop.f32.mrf.mxu0
      %v420 = vadd.f32 %v276, %v419
      %v421 = vpop.f32.mrf.mxu0
      %422 = vmatprep.mubr.f32.mxu0 0.0
      %423 = vmatmul.mubr.f32.gmra.mxu0 %v239
      %v424 = vpop.f32.mrf.mxu0
      %v425 = vadd.f32 %v276, %v424
      %v426 = vpop.f32.mrf.mxu0
      %427 = vmatprep.mubr.f32.mxu0 0.0
      %428 = vmatmul.mubr.f32.gmra.mxu0 %v240
      %v429 = vpop.f32.mrf.mxu0
      %v430 = vadd.f32 %v276, %v429
      %v431 = vpop.f32.mrf.mxu0
      %432 = vmatprep.mubr.f32.mxu0 0.0
      %433 = vmatmul.mubr.f32.gmra.mxu0 %v241
      %v434 = vpop.f32.mrf.mxu0
      %v435 = vadd.f32 %v276, %v434
      %v436 = vpop.f32.mrf.mxu0
      %437 = vmatprep.mubr.f32.mxu0 0.0
      %438 = vmatmul.mubr.f32.gmra.mxu0 %v242
      %v439 = vpop.f32.mrf.mxu0
      %v440 = vadd.f32 %v276, %v439
      %v441 = vpop.f32.mrf.mxu0
      %442 = vmatprep.mubr.f32.mxu0 0.0
      %443 = vmatmul.mubr.f32.gmra.mxu0 %v243
      %v444 = vpop.f32.mrf.mxu0
      %v445 = vadd.f32 %v276, %v444
      %v446 = vpop.f32.mrf.mxu0
      %447 = vmatprep.mubr.f32.mxu0 0.0
      %448 = vmatmul.mubr.f32.gmra.mxu0 %v244
      %v449 = vpop.f32.mrf.mxu0
      %v450 = vadd.f32 %v276, %v449
      %v451 = vpop.f32.mrf.mxu0
      %452 = vmatprep.mubr.f32.mxu0 0.0
      %453 = vmatmul.mubr.f32.gmra.mxu0 %v245
      %v454 = vpop.f32.mrf.mxu0
      %v455 = vadd.f32 %v276, %v454
      %v456 = vpop.f32.mrf.mxu0
      %457 = vmatprep.mubr.f32.mxu0 0.0
      %458 = vmatmul.mubr.f32.gmra.mxu0 %v246
      %v459 = vpop.f32.mrf.mxu0
      %v460 = vadd.f32 %v276, %v459
      %v461 = vpop.f32.mrf.mxu0
      %462 = vmatprep.mubr.f32.mxu0 0.0
      %463 = vmatmul.mubr.f32.gmra.mxu0 %v247
      %v464 = vpop.f32.mrf.mxu0
      %v465 = vadd.f32 %v276, %v464
      %v466 = vpop.f32.mrf.mxu0
      %467 = vmatprep.mubr.f32.mxu0 0.0
      %468 = vmatmul.mubr.f32.gmra.mxu0 %v248
      %v469 = vpop.f32.mrf.mxu0
      %v470 = vadd.f32 %v276, %v469
      %v471 = vpop.f32.mrf.mxu0
      %472 = vmatprep.mubr.f32.mxu0 0.0
      %473 = vmatmul.mubr.f32.gmra.mxu0 %v249
      %v474 = vpop.f32.mrf.mxu0
      %v475 = vadd.f32 %v276, %v474
      %v476 = vpop.f32.mrf.mxu0
      %477 = vmatprep.mubr.f32.mxu0 0.0
      %478 = vmatmul.mubr.f32.gmra.mxu0 %v250
      %v479 = vpop.f32.mrf.mxu0
      %v480 = vadd.f32 %v276, %v479
      %v481 = vpop.f32.mrf.mxu0
      %482 = vmatprep.mubr.f32.mxu0 0.0
      %483 = vmatmul.mubr.f32.gmra.mxu0 %v251
      %v484 = vpop.f32.mrf.mxu0
      %v485 = vadd.f32 %v276, %v484
      %v486 = vpop.f32.mrf.mxu0
      %487 = vmatprep.mubr.f32.mxu0 0.0
      %488 = vmatmul.mubr.f32.gmra.mxu0 %v252
      %v489 = vpop.f32.mrf.mxu0
      %v490 = vadd.f32 %v276, %v489
      %v491 = vpop.f32.mrf.mxu0
      %492 = vmatprep.mubr.f32.mxu0 0.0
      %493 = vmatmul.mubr.f32.gmra.mxu0 %v253
      %v494 = vpop.f32.mrf.mxu0
      %v495 = vadd.f32 %v276, %v494
      %v496 = vpop.f32.mrf.mxu0
      %497 = vmatprep.mubr.f32.mxu0 0.0
      %498 = vmatmul.mubr.f32.gmra.mxu0 %v254
      %v499 = vpop.f32.mrf.mxu0
      %v500 = vadd.f32 %v276, %v499
      %v501 = vpop.f32.mrf.mxu0
      %502 = vdwg.mxu0
      %v503 = vld [vmem:[%s215] sm:$0xff]
      %v504 = vld [vmem:[%s215 + $0x8] sm:$0xff]
      %v505 = vld [vmem:[%s215 + $0x10] sm:$0xff]
      %v506 = vld [vmem:[%s215 + $0x18] sm:$0xff]
      %v507 = vld [vmem:[%s215 + $0x20] sm:$0xff]
      %v508 = vld [vmem:[%s215 + $0x28] sm:$0xff]
      %v509 = vld [vmem:[%s215 + $0x30] sm:$0xff]
      %v510 = vld [vmem:[%s215 + $0x38] sm:$0xff]
      %v511 = vld [vmem:[%s215 + $0x40] sm:$0xff]
      %v512 = vld [vmem:[%s215 + $0x48] sm:$0xff]
      %v513 = vld [vmem:[%s215 + $0x50] sm:$0xff]
      %v514 = vld [vmem:[%s215 + $0x58] sm:$0xff]
      %v515 = vld [vmem:[%s215 + $0x60] sm:$0xff]
      %v516 = vld [vmem:[%s215 + $0x68] sm:$0xff]
      %v517 = vld [vmem:[%s215 + $0x70] sm:$0xff]
      %v518 = vld [vmem:[%s215 + $0x78] sm:$0xff]
      %v519 = vld [vmem:[%s215 + $0x80] sm:$0xff]
      %v520 = vld [vmem:[%s215 + $0x88] sm:$0xff]
      %v521 = vld [vmem:[%s215 + $0x90] sm:$0xff]
      %v522 = vld [vmem:[%s215 + $0x98] sm:$0xff]
      %v523 = vld [vmem:[%s215 + $0xa0] sm:$0xff]
      %v524 = vld [vmem:[%s215 + $0xa8] sm:$0xff]
      %v525 = vld [vmem:[%s215 + $0xb0] sm:$0xff]
      %v526 = vld [vmem:[%s215 + $0xb8] sm:$0xff]
      %v527 = vld [vmem:[%s215 + $0xc0] sm:$0xff]
      %v528 = vld [vmem:[%s215 + $0xc8] sm:$0xff]
      %v529 = vld [vmem:[%s215 + $0xd0] sm:$0xff]
      %v530 = vld [vmem:[%s215 + $0xd8] sm:$0xff]
      %v531 = vld [vmem:[%s215 + $0xe0] sm:$0xff]
      %v532 = vld [vmem:[%s215 + $0xe8] sm:$0xff]
      %v533 = vld [vmem:[%s215 + $0xf0] sm:$0xff]
      %v534 = vld [vmem:[%s215 + $0xf8] sm:$0xff]
      %v535 = vadd.f32 %v345, %v503
      %v536 = vadd.f32 %v350, %v504
      %v537 = vadd.f32 %v355, %v505
      %v538 = vadd.f32 %v360, %v506
      %v539 = vadd.f32 %v365, %v507
      %v540 = vadd.f32 %v370, %v508
      %v541 = vadd.f32 %v375, %v509
      %v542 = vadd.f32 %v380, %v510
      %v543 = vadd.f32 %v385, %v511
      %v544 = vadd.f32 %v390, %v512
      %v545 = vadd.f32 %v395, %v513
      %v546 = vadd.f32 %v400, %v514
      %v547 = vadd.f32 %v405, %v515
      %v548 = vadd.f32 %v410, %v516
      %v549 = vadd.f32 %v415, %v517
      %v550 = vadd.f32 %v420, %v518
      %v551 = vadd.f32 %v425, %v519
      %v552 = vadd.f32 %v430, %v520
      %v553 = vadd.f32 %v435, %v521
      %v554 = vadd.f32 %v440, %v522
      %v555 = vadd.f32 %v445, %v523
      %v556 = vadd.f32 %v450, %v524
      %v557 = vadd.f32 %v455, %v525
      %v558 = vadd.f32 %v460, %v526
      %v559 = vadd.f32 %v465, %v527
      %v560 = vadd.f32 %v470, %v528
      %v561 = vadd.f32 %v475, %v529
      %v562 = vadd.f32 %v480, %v530
      %v563 = vadd.f32 %v485, %v531
      %v564 = vadd.f32 %v490, %v532
      %v565 = vadd.f32 %v495, %v533
      %v566 = vadd.f32 %v500, %v534
      %567 = vst [vmem:[%s221] sm:$0xff] %v535
      %568 = vst [vmem:[%s221 + $0x8] sm:$0xff] %v536
      %569 = vst [vmem:[%s221 + $0x10] sm:$0xff] %v537
      %570 = vst [vmem:[%s221 + $0x18] sm:$0xff] %v538
      %571 = vst [vmem:[%s221 + $0x20] sm:$0xff] %v539
      %572 = vst [vmem:[%s221 + $0x28] sm:$0xff] %v540
      %573 = vst [vmem:[%s221 + $0x30] sm:$0xff] %v541
      %574 = vst [vmem:[%s221 + $0x38] sm:$0xff] %v542
      %575 = vst [vmem:[%s221 + $0x40] sm:$0xff] %v543
      %576 = vst [vmem:[%s221 + $0x48] sm:$0xff] %v544
      %577 = vst [vmem:[%s221 + $0x50] sm:$0xff] %v545
      %578 = vst [vmem:[%s221 + $0x58] sm:$0xff] %v546
      %579 = vst [vmem:[%s221 + $0x60] sm:$0xff] %v547
      %580 = vst [vmem:[%s221 + $0x68] sm:$0xff] %v548
      %581 = vst [vmem:[%s221 + $0x70] sm:$0xff] %v549
      %582 = vst [vmem:[%s221 + $0x78] sm:$0xff] %v550
      %583 = vst [vmem:[%s221 + $0x80] sm:$0xff] %v551
      %584 = vst [vmem:[%s221 + $0x88] sm:$0xff] %v552
      %585 = vst [vmem:[%s221 + $0x90] sm:$0xff] %v553
      %586 = vst [vmem:[%s221 + $0x98] sm:$0xff] %v554
      %587 = vst [vmem:[%s221 + $0xa0] sm:$0xff] %v555
      %588 = vst [vmem:[%s221 + $0xa8] sm:$0xff] %v556
      %589 = vst [vmem:[%s221 + $0xb0] sm:$0xff] %v557
      %590 = vst [vmem:[%s221 + $0xb8] sm:$0xff] %v558
      %591 = vst [vmem:[%s221 + $0xc0] sm:$0xff] %v559
      %592 = vst [vmem:[%s221 + $0xc8] sm:$0xff] %v560
      %593 = vst [vmem:[%s221 + $0xd0] sm:$0xff] %v561
      %594 = vst [vmem:[%s221 + $0xd8] sm:$0xff] %v562
      %595 = vst [vmem:[%s221 + $0xe0] sm:$0xff] %v563
      %596 = vst [vmem:[%s221 + $0xe8] sm:$0xff] %v564
      %597 = vst [vmem:[%s221 + $0xf0] sm:$0xff] %v565
      %598 = vst [vmem:[%s221 + $0xf8] sm:$0xff] %v566
      %s599 = smul.u32 32, %s15
      %p600 = scmp.lt.s32.totalorder %s599, 63
      %s601 = scalar_select %p600, %s599, 63
      %s602 = smul.addr %s601, 8
      %s603 = scalar_lea.vmem %s4, %s602
      // Predicated region
      $region37: #{forward.3} parent=35 // pred_check
        %p604 = pneg %p127
      $region38: #{forward.3} parent=35 // pred_check_branch
        %606 = sbr.rel (%p604) target = $region40
      $region39: #{forward.3} parent=35 // pred_region
        %s607 = smul.u32 32, %s15
      $region40: #{forward.3} parent=35 // pred_fallthru
        _
    $region36: #{forward.3} parent=5 // pred_fallthru
      _
    %p608 = scmp.le.s32.totalorder 2, %s10
    // Predicated region
    $region41: #{forward.3} parent=5 // pred_check
      %p609 = pneg %p608
    $region42: #{forward.3} parent=5 // pred_check_branch
      %611 = sbr.rel (%p609) target = $region44
    $region43: #{forward.3} parent=5 // pred_region
      %s612 = ssub.s32 %s10, 2
      // Predicated region
      $region45: #{forward.3} parent=43 // pred_check
        %p613 = pneg %p133
      $region46: #{forward.3} parent=43 // pred_check_branch
        %615 = sbr.rel (%p613) target = $region48
      $region47: #{forward.3} parent=43 // pred_region
        %s616 = smul.u32 32, %s16
        %p617 = scmp.lt.s32.totalorder %s616, 63
        %s618 = scalar_select %p617, %s616, 63
        %s619 = smul.addr %s618, 8
        %s620 = scalar_lea.vmem %s4, %s619
      $region48: #{forward.3} parent=43 // pred_fallthru
        _
    $region44: #{forward.3} parent=5 // pred_fallthru
      _
  $region6: #{forward.3} parent=0 // loop_footer
    %s14 = sadd.s32 1, %s10
  $region7: #{forward.3} parent=0 // loop_footer_branch
    %9 = sbr.rel target = $region3
  $region8: #{forward.3} parent=0 // loop_exit
    _

</llo_original>
